<compile_context>
chip_gen: v7x
topology: tpu7x:2x2x1
jax: 0.10.0
libtpu: 0.0.40
codegen_flags: <defaults>
</compile_context>

<pallas_src>
import jax
import jax.numpy as jnp
from jax import lax
from jax.experimental import pallas as pl
from jax.experimental.pallas import tpu as pltpu

EPS = 1e-5  # LayerNorm default eps


def _round_up(x, m):
    return ((x + m - 1) // m) * m


def _conv_swish_ln_kernel(x_ref, m_ref, w_ref, b_ref, g_ref, beta_ref, o_ref):
    # x_ref    : (1, Cin, tl)    one batch element, channels-first (NCL) slab
    # m_ref    : (1, 1, tl)      mask (x.dtype)
    # w_ref    : (Cout, Cin)     conv1d(k=1) weight, natural (out, in) layout, resident
    # b_ref    : (Cout, 1) f32   conv bias
    # g_ref    : (Cout, 1) f32   LayerNorm gamma
    # beta_ref : (Cout, 1) f32   LayerNorm beta
    # o_ref    : (1, Cout, tl)
    x = x_ref[0]          # (Cin, tl), native dtype (bf16 stays bf16 on the MXU)
    w = w_ref[...]        # (Cout, Cin), native dtype

    # Conv1d(kernel_size=1) == pointwise channel matmul on the MXU; f32 accumulation.
    y = jnp.dot(w, x, preferred_element_type=jnp.float32) + b_ref[...]

    # Mask multiply (broadcast over channels / sublanes).
    y = y * m_ref[0].astype(jnp.float32)

    # SiLU / Swish: y * sigmoid(y) with sigmoid(y) = 0.5 * (1 + tanh(y/2)).
    # Single EUP transcendental; saturates cleanly at extremes (tanh -> +-1).
    y = y * (0.5 + 0.5 * jnp.tanh(0.5 * y))

    # LayerNorm over channels (sublane/XLU reduction, biased variance, two-pass for
    # numerical safety -- no channel padding exists, so no masking is needed).
    inv_c = jnp.float32(1.0 / y.shape[0])
    mu = jnp.sum(y, axis=0, keepdims=True) * inv_c
    d = y - mu
    var = jnp.sum(d * d, axis=0, keepdims=True) * inv_c
    y = d * lax.rsqrt(var + EPS)
    y = y * g_ref[...] + beta_ref[...]

    o_ref[0] = y.astype(o_ref.dtype)


def conv_swish_block(x, x_mask, conv_w, conv_b, ln_gamma, ln_beta,
                     *, max_len_tile=512, vmem_limit_bytes=32 * 1024 * 1024):
    """x: (B, Cin, L) NCL, x_mask: (B, 1, L).  Returns (B, Cout, L), matching PyTorch."""
    B, Cin, L = x.shape
    Cout, Cin_w, ksize = conv_w.shape
    assert Cin_w == Cin, "weight in_channels must match x"
    assert ksize == 1, "only kernel_size=1 supported"
    assert max_len_tile % 128 == 0 and max_len_tile >= 128

    # Length padding only to the lane width (128); pick the largest 128-multiple tile
    # <= max_len_tile that divides the padded length (no dead columns beyond L_p).
    L_p = _round_up(L, 128)
    tl = 128
    for cand in range(min(max_len_tile, L_p), 127, -128):
        if L_p % cand == 0:
            tl = cand
            break

    if L_p != L:
        x_in = jnp.pad(x, ((0, 0), (0, 0), (0, L_p - L)))
        m_in = jnp.pad(x_mask.astype(x.dtype), ((0, 0), (0, 0), (0, L_p - L)))
    else:
        x_in = x
        m_in = x_mask.astype(x.dtype)

    w2 = conv_w[:, :, 0].astype(x.dtype)                       # (Cout, Cin)
    b2 = conv_b.astype(jnp.float32).reshape(Cout, 1)
    g2 = ln_gamma.astype(jnp.float32).reshape(Cout, 1)
    be2 = ln_beta.astype(jnp.float32).reshape(Cout, 1)

    out = pl.pallas_call(
        _conv_swish_ln_kernel,
        out_shape=jax.ShapeDtypeStruct((B, Cout, L_p), x.dtype),
        grid_spec=pltpu.PrefetchScalarGridSpec(
            num_scalar_prefetch=0,
            grid=(B, L_p // tl),
            in_specs=[
                pl.BlockSpec((1, Cin, tl), lambda b, l: (b, 0, l)),   # x slab
                pl.BlockSpec((1, 1, tl), lambda b, l: (b, 0, l)),     # mask slab
                pl.BlockSpec((Cout, Cin), lambda b, l: (0, 0)),       # weight (resident)
                pl.BlockSpec((Cout, 1), lambda b, l: (0, 0)),         # bias
                pl.BlockSpec((Cout, 1), lambda b, l: (0, 0)),         # gamma
                pl.BlockSpec((Cout, 1), lambda b, l: (0, 0)),         # beta
            ],
            out_specs=pl.BlockSpec((1, Cout, tl), lambda b, l: (b, 0, l)),
        ),
        compiler_params=pltpu.CompilerParams(
            dimension_semantics=("parallel", "parallel"),
            vmem_limit_bytes=vmem_limit_bytes,
        ),
    )(x_in, m_in, w2, b2, g2, be2)

    if L_p != L:
        out = out[:, :, :L]
    return out


def _reference(x, x_mask, conv_w, conv_b, ln_gamma, ln_beta):
    y = jnp.einsum("oc,bcl->bol", conv_w[:, :, 0], x,
                   precision=jax.lax.Precision.HIGHEST) + conv_b[None, :, None]
    y = y * x_mask
    y = y * jax.nn.sigmoid(y)
    mu = jnp.mean(y, axis=1, keepdims=True)
    var = jnp.mean((y - mu) ** 2, axis=1, keepdims=True)
    y = (y - mu) * jax.lax.rsqrt(var + EPS)
    return y * ln_gamma[None, :, None] + ln_beta[None, :, None]


if __name__ == "__main__":
    key = jax.random.PRNGKey(0)

    # Small configs: one "nice" shape, one exercising every irregular path
    # (Cin/Cout not multiples of 8, L not a multiple of 128), one with L already
    # lane-aligned (no wrapper pad/slice at all).
    configs = [
        dict(B=2, Cin=4, Cout=8, L=16),
        dict(B=2, Cin=3, Cout=6, L=20),
        dict(B=2, Cin=8, Cout=8, L=256),
    ]

    for cfg in configs:
        B, Cin, Cout, L = cfg["B"], cfg["Cin"], cfg["Cout"], cfg["L"]
        key, kx, km, kw, kb, kg, kbe = jax.random.split(key, 7)

        x = jax.random.normal(kx, (B, Cin, L), dtype=jnp.float32)
        x_mask = (jax.random.uniform(km, (B, 1, L)) > 0.2).astype(jnp.float32)

        conv_w = 0.1 * jax.random.normal(kw, (Cout, Cin, 1), dtype=jnp.float32)
        conv_b = 0.1 * jax.random.normal(kb, (Cout,), dtype=jnp.float32)
        ln_gamma = 1.0 + 0.1 * jax.random.normal(kg, (Cout,), dtype=jnp.float32)
        ln_beta = 0.1 * jax.random.normal(kbe, (Cout,), dtype=jnp.float32)

        out = conv_swish_block(x, x_mask, conv_w, conv_b, ln_gamma, ln_beta)
        out = jax.block_until_ready(out)

        ref = _reference(x, x_mask, conv_w, conv_b, ln_gamma, ln_beta)

        assert out.shape == (B, Cout, L)
        # Tolerance accounts for the EUP transcendental (tanh-form sigmoid) and MXU
        # f32 accumulation-order differences vs. the XLA reference.
        assert jnp.allclose(out, ref, atol=2e-4, rtol=2e-4), (
            f"mismatch for cfg={cfg}: max abs err "
            f"{float(jnp.max(jnp.abs(out - ref)))}"
        )

    print("KERNEL_OK")
</pallas_src>

<mosaic_0001>
module attributes {stable_mosaic.version = 11 : i64} {
  func.func @_conv_swish_ln_kernel(%arg0: i32, %arg1: i32, %arg2: memref<1x4x128xf32, #tpu.memory_space<vmem>>, %arg3: memref<1x1x128xf32, #tpu.memory_space<vmem>>, %arg4: memref<8x4xf32, #tpu.memory_space<vmem>>, %arg5: memref<8x1xf32, #tpu.memory_space<vmem>>, %arg6: memref<8x1xf32, #tpu.memory_space<vmem>>, %arg7: memref<8x1xf32, #tpu.memory_space<vmem>>, %arg8: memref<1x8x128xf32, #tpu.memory_space<vmem>>) attributes {dimension_semantics = [#tpu.dimension_semantics<parallel>, #tpu.dimension_semantics<parallel>], iteration_bounds = array<i64: 2, 1>, scalar_prefetch = 0 : i64, scratch_operands = 0 : i64, tpu.core_type = #tpu.core_type<tc>, window_params = [{transform_indices = @transform_0, window_bounds = array<i64: 1, 4, 128>}, {transform_indices = @transform_1, window_bounds = array<i64: 1, 1, 128>}, {pipeline_mode = #tpu.pipeline_mode<synchronous>, transform_indices = @transform_2, window_bounds = array<i64: 8, 4>}, {pipeline_mode = #tpu.pipeline_mode<synchronous>, transform_indices = @transform_3, window_bounds = array<i64: 8, 1>}, {pipeline_mode = #tpu.pipeline_mode<synchronous>, transform_indices = @transform_4, window_bounds = array<i64: 8, 1>}, {pipeline_mode = #tpu.pipeline_mode<synchronous>, transform_indices = @transform_5, window_bounds = array<i64: 8, 1>}, {transform_indices = @transform_6, window_bounds = array<i64: 1, 8, 128>}]} {
    %c0 = arith.constant 0 : index
    %c0_0 = arith.constant 0 : index
    %c0_1 = arith.constant 0 : index
    %0 = vector.load %arg2[%c0, %c0_0, %c0_1] : memref<1x4x128xf32, #tpu.memory_space<vmem>>, vector<1x4x128xf32>
    %1 = vector.shape_cast %0 : vector<1x4x128xf32> to vector<4x128xf32>
    %c0_2 = arith.constant 0 : index
    %c0_3 = arith.constant 0 : index
    %2 = vector.load %arg4[%c0_2, %c0_3] : memref<8x4xf32, #tpu.memory_space<vmem>>, vector<8x4xf32>
    %cst = arith.constant dense<0.000000e+00> : vector<8x128xf32>
    %3 = tpu.matmul %2, %1, %cst {dimension_numbers = #tpu.dot_dimension_numbers<[1], [0], [0], [1], [0, 0, 1, 1], [], []>} : vector<8x4xf32>, vector<4x128xf32>, vector<8x128xf32> -> vector<8x128xf32>
    %c0_4 = arith.constant 0 : index
    %c0_5 = arith.constant 0 : index
    %4 = vector.load %arg5[%c0_4, %c0_5] : memref<8x1xf32, #tpu.memory_space<vmem>>, vector<8x1xf32>
    %5 = vector.broadcast %4 : vector<8x1xf32> to vector<8x128xf32>
    %6 = arith.addf %3, %5 : vector<8x128xf32>
    %c0_6 = arith.constant 0 : index
    %c0_7 = arith.constant 0 : index
    %c0_8 = arith.constant 0 : index
    %7 = vector.load %arg3[%c0_6, %c0_7, %c0_8] : memref<1x1x128xf32, #tpu.memory_space<vmem>>, vector<1x1x128xf32>
    %8 = vector.shape_cast %7 : vector<1x1x128xf32> to vector<1x128xf32>
    %9 = vector.broadcast %8 : vector<1x128xf32> to vector<8x128xf32>
    %10 = arith.mulf %6, %9 : vector<8x128xf32>
    %cst_9 = arith.constant 5.000000e-01 : f32
    %11 = vector.broadcast %cst_9 : f32 to vector<8x128xf32>
    %12 = arith.mulf %11, %10 : vector<8x128xf32>
    %13 = math.tanh %12 : vector<8x128xf32>
    %cst_10 = arith.constant 5.000000e-01 : f32
    %14 = vector.broadcast %cst_10 : f32 to vector<8x128xf32>
    %15 = arith.mulf %14, %13 : vector<8x128xf32>
    %cst_11 = arith.constant 5.000000e-01 : f32
    %16 = vector.broadcast %cst_11 : f32 to vector<8x128xf32>
    %17 = arith.addf %16, %15 : vector<8x128xf32>
    %18 = arith.mulf %10, %17 : vector<8x128xf32>
    %cst_12 = arith.constant dense<0.000000e+00> : vector<128xf32>
    %19 = vector.multi_reduction <add>, %18, %cst_12 [0] : vector<8x128xf32> to vector<128xf32>
    %20 = vector.shape_cast %19 : vector<128xf32> to vector<1x128xf32>
    %cst_13 = arith.constant 1.250000e-01 : f32
    %21 = vector.broadcast %cst_13 : f32 to vector<1x128xf32>
    %22 = arith.mulf %20, %21 : vector<1x128xf32>
    %23 = vector.broadcast %22 : vector<1x128xf32> to vector<8x128xf32>
    %24 = arith.subf %18, %23 : vector<8x128xf32>
    %25 = arith.mulf %24, %24 : vector<8x128xf32>
    %cst_14 = arith.constant dense<0.000000e+00> : vector<128xf32>
    %26 = vector.multi_reduction <add>, %25, %cst_14 [0] : vector<8x128xf32> to vector<128xf32>
    %27 = vector.shape_cast %26 : vector<128xf32> to vector<1x128xf32>
    %cst_15 = arith.constant 1.250000e-01 : f32
    %28 = vector.broadcast %cst_15 : f32 to vector<1x128xf32>
    %29 = arith.mulf %27, %28 : vector<1x128xf32>
    %cst_16 = arith.constant 9.99999974E-6 : f32
    %30 = vector.broadcast %cst_16 : f32 to vector<1x128xf32>
    %31 = arith.addf %29, %30 : vector<1x128xf32>
    %32 = math.rsqrt %31 : vector<1x128xf32>
    %33 = vector.broadcast %32 : vector<1x128xf32> to vector<8x128xf32>
    %34 = arith.mulf %24, %33 : vector<8x128xf32>
    %c0_17 = arith.constant 0 : index
    %c0_18 = arith.constant 0 : index
    %35 = vector.load %arg6[%c0_17, %c0_18] : memref<8x1xf32, #tpu.memory_space<vmem>>, vector<8x1xf32>
    %36 = vector.broadcast %35 : vector<8x1xf32> to vector<8x128xf32>
    %37 = arith.mulf %34, %36 : vector<8x128xf32>
    %c0_19 = arith.constant 0 : index
    %c0_20 = arith.constant 0 : index
    %38 = vector.load %arg7[%c0_19, %c0_20] : memref<8x1xf32, #tpu.memory_space<vmem>>, vector<8x1xf32>
    %39 = vector.broadcast %38 : vector<8x1xf32> to vector<8x128xf32>
    %40 = arith.addf %37, %39 : vector<8x128xf32>
    %c0_21 = arith.constant 0 : index
    %c0_22 = arith.constant 0 : index
    %c0_23 = arith.constant 0 : index
    %41 = vector.load %arg8[%c0_21, %c0_22, %c0_23] : memref<1x8x128xf32, #tpu.memory_space<vmem>>, vector<1x8x128xf32>
    %42 = vector.shape_cast %41 : vector<1x8x128xf32> to vector<8x128xf32>
    %43 = vector.shape_cast %40 : vector<8x128xf32> to vector<1x8x128xf32>
    tpu.vector_store %arg8[%c0_21, %c0_22, %c0_23], %43 {strides = array<i32>} : memref<1x8x128xf32, #tpu.memory_space<vmem>>, vector<1x8x128xf32>,
    return
  }
  func.func @transform_0(%arg0: i32, %arg1: i32) -> (i32, i32, i32) {
    %c0_i32 = arith.constant 0 : i32
    %c0_i32_0 = arith.constant 0 : i32
    return %arg0, %c0_i32, %arg1 : i32, i32, i32
  }
  func.func @transform_1(%arg0: i32, %arg1: i32) -> (i32, i32, i32) {
    %c0_i32 = arith.constant 0 : i32
    %c0_i32_0 = arith.constant 0 : i32
    return %arg0, %c0_i32, %arg1 : i32, i32, i32
  }
  func.func @transform_2(%arg0: i32, %arg1: i32) -> (i32, i32) {
    %c0_i32 = arith.constant 0 : i32
    %c0_i32_0 = arith.constant 0 : i32
    %c0_i32_1 = arith.constant 0 : i32
    return %c0_i32, %c0_i32_0 : i32, i32
  }
  func.func @transform_3(%arg0: i32, %arg1: i32) -> (i32, i32) {
    %c0_i32 = arith.constant 0 : i32
    %c0_i32_0 = arith.constant 0 : i32
    %c0_i32_1 = arith.constant 0 : i32
    return %c0_i32, %c0_i32_0 : i32, i32
  }
  func.func @transform_4(%arg0: i32, %arg1: i32) -> (i32, i32) {
    %c0_i32 = arith.constant 0 : i32
    %c0_i32_0 = arith.constant 0 : i32
    %c0_i32_1 = arith.constant 0 : i32
    return %c0_i32, %c0_i32_0 : i32, i32
  }
  func.func @transform_5(%arg0: i32, %arg1: i32) -> (i32, i32) {
    %c0_i32 = arith.constant 0 : i32
    %c0_i32_0 = arith.constant 0 : i32
    %c0_i32_1 = arith.constant 0 : i32
    return %c0_i32, %c0_i32_0 : i32, i32
  }
  func.func @transform_6(%arg0: i32, %arg1: i32) -> (i32, i32, i32) {
    %c0_i32 = arith.constant 0 : i32
    %c0_i32_0 = arith.constant 0 : i32
    return %arg0, %c0_i32, %arg1 : i32, i32, i32
  }
}

</mosaic_0001>

<llo_original>
// kernel: tpu_custom_call.1
$region0: #{tpu_custom_call.1}
  #allocation0 [shape = 'u32[]', space=smem, size = 0x4, offset = 0x4, fixed_abs, tag = 'smem constant byte address 0x4 - core index']
  #allocation1 [shape = 'u32[144,128]{1,0:T(1,128)}', space=vmem, size = 0x12000, scoped, tag = 'internal scratch']
  %s0 = inlined_call_operand.vmem [shape: f32[2,4,128], index: 0, kind: input, shape index: {}]
  %s1 = inlined_call_operand.vmem [shape: f32[2,1,128], index: 1, kind: input, shape index: {}]
  %s2 = inlined_call_operand.vmem [shape: f32[8,4], index: 2, kind: input, shape index: {}]
  %s3 = inlined_call_operand.vmem [shape: f32[8,1], index: 3, kind: input, shape index: {}]
  %s4 = inlined_call_operand.vmem [shape: f32[8,1], index: 4, kind: input, shape index: {}]
  %s5 = inlined_call_operand.vmem [shape: f32[8,1], index: 5, kind: input, shape index: {}]
  %s6 = inlined_call_operand.hbm [shape: f32[2,8,128], index: 6, kind: output, shape index: {}]
  %s7 = sld [smem:[#allocation0]]
  $region57: #{tpu_custom_call.1} parent=0
    _
  %s9 = ssub.s32 1, %s7
  %s10 = scalar_select 0, %s9, %s7
  $region1: #{tpu_custom_call.1} parent=0
    #allocation2 [shape = 'u8[8192]{0}', space=vmem, size = 0x2000, scoped, tag = 'output window, operand 0']
    #allocation3 [shape = 's32[2]{0}', space=sflag, size = 0x8, scoped, tag = 'scoped memory for tpu_custom_call.1']
    %11 = vsyncpa [#allocation3], 0
    %s12 = scalar_lea.sflag [#allocation3], 1
    %13 = vsyncpa %s12, 0
    loop: start=0, step=1, limit=4
    $region2: #{tpu_custom_call.1} parent=1 // loop_pre_header
      _
    $region3: #{tpu_custom_call.1} parent=1 // loop_header
      %s15 = sphi 0, %s19
      %p16 = scmp.ge.s32.totalorder %s15, 4
      %s22 = sphi 0, %s34
      %s23 = sphi 0, %s30
      %s24 = sphi 0, %s22
      %s25 = sphi 0, %s23
      %s26 = sphi 0, %s24
      %s27 = sphi 0, %s25
      %s39 = sphi 0, %s41
      %s42 = sphi 0, %s39
      %s43 = sphi 0, %s42
      %s59 = sphi 0, %s43
      %s67 = sphi 0, %s69
      %s70 = sphi 0, %s67
      %s71 = sphi 0, %s70
      %s87 = sphi 0, %s71
      %s91 = sphi 0, %s91
      %s93 = sphi 0, %s91
      %s94 = sphi 0, %s93
      %s108 = sphi 0, %s94
      %s112 = sphi 0, %s112
      %s114 = sphi 0, %s112
      %s115 = sphi 0, %s114
      %s129 = sphi 0, %s115
      %s133 = sphi 0, %s133
      %s135 = sphi 0, %s133
      %s136 = sphi 0, %s135
      %s150 = sphi 0, %s136
      %s154 = sphi 0, %s154
      %s156 = sphi 0, %s154
      %s157 = sphi 0, %s156
      %s171 = sphi 0, %s157
      %s179 = sphi 0, %s181
      %s182 = sphi 0, %s179
      %s183 = sphi 0, %s182
      %s199 = sphi 0, %s183
    $region4: #{tpu_custom_call.1} parent=1 // loop_header_branch
      %18 = sbr.rel (%p16) target = $region8
    $region5: #{tpu_custom_call.1} parent=1 // loop_body
      %s20 = ssub.s32 %s15, 1
      %s21 = ssub.s32 %s15, 2
      %s28 = sadd.s32 1, %s23
      %p29 = scmp.ge.s32.totalorder %s28, 1
      %s30 = scalar_select %p29, 0, %s28
      %s31 = sadd.s32 1, %s22
      %s32 = scalar_select %p29, %s31, %s22
      %p33 = scmp.ge.s32.totalorder %s32, 2
      %s34 = scalar_select %p33, 0, %s32
      %s35 = ssub.s32 %s22, %s34
      %s36 = ssub.s32 %s23, %s30
      %s37 = sor.u32 %s35, %s36
      %p38 = scmp.eq.s32.totalorder %s37, 0
      %s40 = sadd.s32 %s39, 1
      %s41 = scalar_select %p38, %s39, %s40
      %p44 = pneg %p38
      %p45 = scmp.eq.s32.totalorder %s15, 1
      %p46 = por %p44, %p45
      %p47 = scmp.ne.s32.totalorder %s39, %s42
      %p48 = scmp.eq.s32.totalorder %s15, 0
      %p49 = por %p47, %p48
      %p50 = scmp.ne.s32.totalorder %s39, %s42
      %p51 = scmp.eq.s32.totalorder %s20, 1
      %p52 = por %p50, %p51
      %p53 = scmp.ne.s32.totalorder %s42, %s43
      %p54 = scmp.eq.s32.totalorder %s20, 0
      %p55 = por %p53, %p54
      %p56 = scmp.ne.s32.totalorder %s42, %s43
      %p57 = scmp.eq.s32.totalorder %s21, 1
      %p58 = por %p56, %p57
      %p60 = scmp.ne.s32.totalorder %s43, %s59
      %p61 = scmp.eq.s32.totalorder %s21, 0
      %p62 = por %p60, %p61
      %s63 = ssub.s32 %s22, %s34
      %s64 = ssub.s32 %s23, %s30
      %s65 = sor.u32 %s63, %s64
      %p66 = scmp.eq.s32.totalorder %s65, 0
      %s68 = sadd.s32 %s67, 1
      %s69 = scalar_select %p66, %s67, %s68
      %p72 = pneg %p66
      %p73 = scmp.eq.s32.totalorder %s15, 1
      %p74 = por %p72, %p73
      %p75 = scmp.ne.s32.totalorder %s67, %s70
      %p76 = scmp.eq.s32.totalorder %s15, 0
      %p77 = por %p75, %p76
      %p78 = scmp.ne.s32.totalorder %s67, %s70
      %p79 = scmp.eq.s32.totalorder %s20, 1
      %p80 = por %p78, %p79
      %p81 = scmp.ne.s32.totalorder %s70, %s71
      %p82 = scmp.eq.s32.totalorder %s20, 0
      %p83 = por %p81, %p82
      %p84 = scmp.ne.s32.totalorder %s70, %s71
      %p85 = scmp.eq.s32.totalorder %s21, 1
      %p86 = por %p84, %p85
      %p88 = scmp.ne.s32.totalorder %s71, %s87
      %p89 = scmp.eq.s32.totalorder %s21, 0
      %p90 = por %p88, %p89
      %s92 = sadd.s32 %s91, 1
      %p95 = scmp.eq.s32.totalorder %s15, 1
      %p96 = scmp.ne.s32.totalorder %s91, %s93
      %p97 = scmp.eq.s32.totalorder %s15, 0
      %p98 = por %p96, %p97
      %p99 = scmp.ne.s32.totalorder %s91, %s93
      %p100 = scmp.eq.s32.totalorder %s20, 1
      %p101 = por %p99, %p100
      %p102 = scmp.ne.s32.totalorder %s93, %s94
      %p103 = scmp.eq.s32.totalorder %s20, 0
      %p104 = por %p102, %p103
      %p105 = scmp.ne.s32.totalorder %s93, %s94
      %p106 = scmp.eq.s32.totalorder %s21, 1
      %p107 = por %p105, %p106
      %p109 = scmp.ne.s32.totalorder %s94, %s108
      %p110 = scmp.eq.s32.totalorder %s21, 0
      %p111 = por %p109, %p110
      %s113 = sadd.s32 %s112, 1
      %p116 = scmp.eq.s32.totalorder %s15, 1
      %p117 = scmp.ne.s32.totalorder %s112, %s114
      %p118 = scmp.eq.s32.totalorder %s15, 0
      %p119 = por %p117, %p118
      %p120 = scmp.ne.s32.totalorder %s112, %s114
      %p121 = scmp.eq.s32.totalorder %s20, 1
      %p122 = por %p120, %p121
      %p123 = scmp.ne.s32.totalorder %s114, %s115
      %p124 = scmp.eq.s32.totalorder %s20, 0
      %p125 = por %p123, %p124
      %p126 = scmp.ne.s32.totalorder %s114, %s115
      %p127 = scmp.eq.s32.totalorder %s21, 1
      %p128 = por %p126, %p127
      %p130 = scmp.ne.s32.totalorder %s115, %s129
      %p131 = scmp.eq.s32.totalorder %s21, 0
      %p132 = por %p130, %p131
      %s134 = sadd.s32 %s133, 1
      %p137 = scmp.eq.s32.totalorder %s15, 1
      %p138 = scmp.ne.s32.totalorder %s133, %s135
      %p139 = scmp.eq.s32.totalorder %s15, 0
      %p140 = por %p138, %p139
      %p141 = scmp.ne.s32.totalorder %s133, %s135
      %p142 = scmp.eq.s32.totalorder %s20, 1
      %p143 = por %p141, %p142
      %p144 = scmp.ne.s32.totalorder %s135, %s136
      %p145 = scmp.eq.s32.totalorder %s20, 0
      %p146 = por %p144, %p145
      %p147 = scmp.ne.s32.totalorder %s135, %s136
      %p148 = scmp.eq.s32.totalorder %s21, 1
      %p149 = por %p147, %p148
      %p151 = scmp.ne.s32.totalorder %s136, %s150
      %p152 = scmp.eq.s32.totalorder %s21, 0
      %p153 = por %p151, %p152
      %s155 = sadd.s32 %s154, 1
      %p158 = scmp.eq.s32.totalorder %s15, 1
      %p159 = scmp.ne.s32.totalorder %s154, %s156
      %p160 = scmp.eq.s32.totalorder %s15, 0
      %p161 = por %p159, %p160
      %p162 = scmp.ne.s32.totalorder %s154, %s156
      %p163 = scmp.eq.s32.totalorder %s20, 1
      %p164 = por %p162, %p163
      %p165 = scmp.ne.s32.totalorder %s156, %s157
      %p166 = scmp.eq.s32.totalorder %s20, 0
      %p167 = por %p165, %p166
      %p168 = scmp.ne.s32.totalorder %s156, %s157
      %p169 = scmp.eq.s32.totalorder %s21, 1
      %p170 = por %p168, %p169
      %p172 = scmp.ne.s32.totalorder %s157, %s171
      %p173 = scmp.eq.s32.totalorder %s21, 0
      %p174 = por %p172, %p173
      %s175 = ssub.s32 %s22, %s34
      %s176 = ssub.s32 %s23, %s30
      %s177 = sor.u32 %s175, %s176
      %p178 = scmp.eq.s32.totalorder %s177, 0
      %s180 = sadd.s32 %s179, 1
      %s181 = scalar_select %p178, %s179, %s180
      %p184 = pneg %p178
      %p185 = scmp.eq.s32.totalorder %s15, 1
      %p186 = por %p184, %p185
      %p187 = scmp.ne.s32.totalorder %s179, %s182
      %p188 = scmp.eq.s32.totalorder %s15, 0
      %p189 = por %p187, %p188
      %p190 = scmp.ne.s32.totalorder %s179, %s182
      %p191 = scmp.eq.s32.totalorder %s20, 1
      %p192 = por %p190, %p191
      %p193 = scmp.ne.s32.totalorder %s182, %s183
      %p194 = scmp.eq.s32.totalorder %s20, 0
      %p195 = por %p193, %p194
      %p196 = scmp.ne.s32.totalorder %s182, %s183
      %p197 = scmp.eq.s32.totalorder %s21, 1
      %p198 = por %p196, %p197
      %p200 = scmp.ne.s32.totalorder %s183, %s199
      %p201 = scmp.eq.s32.totalorder %s21, 0
      %p202 = por %p200, %p201
      %p203 = scmp.le.s32.totalorder 1, %s15
      %p204 = scmp.lt.s32.totalorder %s15, 3
      %p205 = pnand %p203, %p204
      %p206 = pneg %p205
      // Predicated region
      $region9: #{tpu_custom_call.1} parent=5 // pred_check
        _
      $region10: #{tpu_custom_call.1} parent=5 // pred_check_branch
        %208 = sbr.rel (%p205) target = $region12
      $region11: #{tpu_custom_call.1} parent=5 // pred_region
        %s209 = ssub.s32 %s15, 1
        // Predicated region
        $region13: #{tpu_custom_call.1} parent=11 // pred_check
          %p210 = pneg %p104
        $region14: #{tpu_custom_call.1} parent=11 // pred_check_branch
          %212 = sbr.rel (%p210) target = $region16
        $region15: #{tpu_custom_call.1} parent=11 // pred_region
          _
        $region16: #{tpu_custom_call.1} parent=11 // pred_fallthru
          _
        // Predicated region
        $region17: #{tpu_custom_call.1} parent=11 // pred_check
          %p213 = pneg %p125
        $region18: #{tpu_custom_call.1} parent=11 // pred_check_branch
          %215 = sbr.rel (%p213) target = $region20
        $region19: #{tpu_custom_call.1} parent=11 // pred_region
          _
        $region20: #{tpu_custom_call.1} parent=11 // pred_fallthru
          _
        // Predicated region
        $region21: #{tpu_custom_call.1} parent=11 // pred_check
          %p216 = pneg %p146
        $region22: #{tpu_custom_call.1} parent=11 // pred_check_branch
          %218 = sbr.rel (%p216) target = $region24
        $region23: #{tpu_custom_call.1} parent=11 // pred_region
          _
        $region24: #{tpu_custom_call.1} parent=11 // pred_fallthru
          _
        // Predicated region
        $region25: #{tpu_custom_call.1} parent=11 // pred_check
          %p219 = pneg %p167
        $region26: #{tpu_custom_call.1} parent=11 // pred_check_branch
          %221 = sbr.rel (%p219) target = $region28
        $region27: #{tpu_custom_call.1} parent=11 // pred_region
          _
        $region28: #{tpu_custom_call.1} parent=11 // pred_fallthru
          _
      $region12: #{tpu_custom_call.1} parent=5 // pred_fallthru
        _
      %p222 = scmp.lt.s32.totalorder %s15, 2
      // Predicated region
      $region29: #{tpu_custom_call.1} parent=5 // pred_check
        %p223 = pneg %p222
      $region30: #{tpu_custom_call.1} parent=5 // pred_check_branch
        %225 = sbr.rel (%p223) target = $region32
      $region31: #{tpu_custom_call.1} parent=5 // pred_region
        // Predicated region
        $region33: #{tpu_custom_call.1} parent=31 // pred_check
          %p226 = pneg %p49
        $region34: #{tpu_custom_call.1} parent=31 // pred_check_branch
          %228 = sbr.rel (%p226) target = $region36
        $region35: #{tpu_custom_call.1} parent=31 // pred_region
          %p229 = scmp.lt.s32.totalorder %s22, 1
          %s230 = scalar_select %p229, %s22, 1
          %p231 = scmp.lt.s32.totalorder %s23, 0
          %s232 = scalar_select %p231, %s23, 0
          %s233 = sadd.s32 %s232, %s230
          %s234 = smul.addr %s233, 4
          %s235 = scalar_lea.vmem %s0, %s234
        $region36: #{tpu_custom_call.1} parent=31 // pred_fallthru
          _
        // Predicated region
        $region37: #{tpu_custom_call.1} parent=31 // pred_check
          %p236 = pneg %p77
        $region38: #{tpu_custom_call.1} parent=31 // pred_check_branch
          %238 = sbr.rel (%p236) target = $region40
        $region39: #{tpu_custom_call.1} parent=31 // pred_region
          %p239 = scmp.lt.s32.totalorder %s22, 1
          %s240 = scalar_select %p239, %s22, 1
          %p241 = scmp.lt.s32.totalorder %s23, 0
          %s242 = scalar_select %p241, %s23, 0
          %s243 = sadd.s32 %s242, %s240
          %s244 = scalar_lea.vmem %s1, %s243
        $region40: #{tpu_custom_call.1} parent=31 // pred_fallthru
          _
      $region32: #{tpu_custom_call.1} parent=5 // pred_fallthru
        _
      %p245 = scmp.le.s32.totalorder 1, %s15
      %p246 = scmp.lt.s32.totalorder %s15, 3
      %p247 = pnand %p245, %p246
      %p248 = pneg %p247
      // Predicated region
      $region41: #{tpu_custom_call.1} parent=5 // pred_check
        _
      $region42: #{tpu_custom_call.1} parent=5 // pred_check_branch
        %250 = sbr.rel (%p247) target = $region44
      $region43: #{tpu_custom_call.1} parent=5 // pred_region
        %s251 = ssub.s32 %s15, 1
        %p252 = scmp.lt.s32.totalorder %s24, 1
        %s253 = scalar_select %p252, %s24, 1
        %p254 = scmp.lt.s32.totalorder %s25, 0
        %s255 = scalar_select %p254, %s25, 0
        %s256 = sadd.s32 %s255, %s253
        %s257 = smul.addr %s256, 4
        %s258 = scalar_lea.vmem %s0, %s257
        %p259 = pneg %p55
        %p260 = pneg %p52
        %p261 = scmp.lt.s32.totalorder %s24, 1
        %s262 = scalar_select %p261, %s24, 1
        %p263 = scmp.lt.s32.totalorder %s25, 0
        %s264 = scalar_select %p263, %s25, 0
        %s265 = sadd.s32 %s264, %s262
        %s266 = scalar_lea.vmem %s1, %s265
        %p267 = pneg %p83
        %p268 = pneg %p80
        %p269 = pneg %p104
        %p270 = pneg %p101
        %p271 = pneg %p125
        %p272 = pneg %p122
        %p273 = pneg %p146
        %p274 = pneg %p143
        %p275 = pneg %p167
        %p276 = pneg %p164
        %p277 = pneg %p195
        %p278 = pneg %p192
        %s279 = sand.u32 %s182, 1
        %s280 = scalar_lea.sflag [#allocation3], %s279
        %s281 = sand.u32 %s182, 1
        %s282 = smul.addr %s281, 8
        %s283 = scalar_lea.vmem [#allocation2], %s282
        %p284 = scmp.lt.s32.totalorder %s24, 1
        %s285 = scalar_select %p284, %s24, 1
        %p286 = scmp.lt.s32.totalorder %s25, 0
        %s287 = scalar_select %p286, %s25, 0
        %s288 = sadd.s32 %s287, %s285
        %s289 = smul.addr %s288, 4
        %s290 = scalar_lea.vmem %s0, %s289
        %p291 = scmp.lt.s32.totalorder %s24, 1
        %s292 = scalar_select %p291, %s24, 1
        %p293 = scmp.lt.s32.totalorder %s25, 0
        %s294 = scalar_select %p293, %s25, 0
        %s295 = sadd.s32 %s294, %s292
        %s296 = scalar_lea.vmem %s1, %s295
        %v297 = vld [vmem:[%s290] sm:$0xf]
        %v298 = vld [vmem:[%s2] sm:$0xff]
        %v299 = vld [vmem:[%s3] sm:$0xff]
        %301 = vset.pattern.permute.xlu0 0
        %302 = vperm.xlu0 %301, %v299
        %v303 = vpop.permute.xlu0 %302
        %vm305 = vcmask 31744
        %v307 = vsel %vm305, %v298, 0
        %vm309 = vcmask 1043456
        %v311 = vsel %vm309, %v297, 0
        %313 = vmatprep.subr.mxu0 0.0
        %314 = vmatpush1.msra.mxu0 %v311
        %315 = vmatprep.subr.mxu0 0.0
        %316 = vmatpush1.msra.mxu0 0.0
        %317 = vmatprep.subr.mxu0 0.0
        %318 = vmatpush1.msra.mxu0 0.0
        %319 = vmatprep.subr.mxu0 0.0
        %320 = vmatpush1.msra.mxu0 0.0
        %321 = vmatprep.subr.mxu0 0.0
        %322 = vmatpush1.msra.mxu0 0.0
        %323 = vmatprep.subr.mxu0 0.0
        %324 = vmatpush1.msra.mxu0 0.0
        %325 = vmatprep.subr.mxu0 0.0
        %326 = vmatpush1.msra.mxu0 0.0
        %327 = vmatprep.subr.mxu0 0.0
        %328 = vmatpush1.msra.mxu0 0.0
        %329 = vmatprep.subr.mxu0 0.0
        %330 = vmatpush1.msra.mxu0 0.0
        %331 = vmatprep.subr.mxu0 0.0
        %332 = vmatpush1.msra.mxu0 0.0
        %333 = vmatprep.subr.mxu0 0.0
        %334 = vmatpush1.msra.mxu0 0.0
        %335 = vmatprep.subr.mxu0 0.0
        %336 = vmatpush1.msra.mxu0 0.0
        %337 = vmatprep.subr.mxu0 0.0
        %338 = vmatpush1.msra.mxu0 0.0
        %339 = vmatprep.subr.mxu0 0.0
        %340 = vmatpush1.msra.mxu0 0.0
        %341 = vmatprep.subr.mxu0 0.0
        %342 = vmatpush1.msra.mxu0 0.0
        %343 = vmatprep.subr.mxu0 0.0
        %344 = vmatpush1.msra.mxu0 0.0
        %345 = vmatprep.subr.mxu0 0.0
        %346 = vmatpush1.msra.mxu0 0.0
        %347 = vmatprep.subr.mxu0 0.0
        %348 = vmatpush1.msra.mxu0 0.0
        %349 = vmatprep.subr.mxu0 0.0
        %350 = vmatpush1.msra.mxu0 0.0
        %351 = vmatprep.subr.mxu0 0.0
        %352 = vmatpush1.msra.mxu0 0.0
        %353 = vmatprep.subr.mxu0 0.0
        %354 = vmatpush1.msra.mxu0 0.0
        %355 = vmatprep.subr.mxu0 0.0
        %356 = vmatpush1.msra.mxu0 0.0
        %357 = vmatprep.subr.mxu0 0.0
        %358 = vmatpush1.msra.mxu0 0.0
        %359 = vmatprep.subr.mxu0 0.0
        %360 = vmatpush1.msra.mxu0 0.0
        %361 = vmatprep.subr.mxu0 0.0
        %362 = vmatpush1.msra.mxu0 0.0
        %363 = vmatprep.subr.mxu0 0.0
        %364 = vmatpush1.msra.mxu0 0.0
        %365 = vmatprep.subr.mxu0 0.0
        %366 = vmatpush1.msra.mxu0 0.0
        %367 = vmatprep.subr.mxu0 0.0
        %368 = vmatpush1.msra.mxu0 0.0
        %369 = vmatprep.subr.mxu0 0.0
        %370 = vmatpush1.msra.mxu0 0.0
        %371 = vmatprep.subr.mxu0 0.0
        %372 = vmatpush1.msra.mxu0 0.0
        %373 = vmatprep.subr.mxu0 0.0
        %374 = vmatpush1.msra.mxu0 0.0
        %375 = vmatprep.subr.mxu0 0.0
        %376 = vmatpush1.msra.mxu0 0.0
        %377 = vmatprep.mubr.f32.mxu0 0.0
        %378 = vmatmul.mubr.f32.gmra.mrb[0].mxu0 %v307
        %v379 = vpop.f32.mrb[0].mxu0
        %v380 = vadd.f32 %v303, %v379
        %v381 = vpop.f32.mrb[0].mxu0
        %382 = vdwg.mxu0
        %v383 = vld [vmem:[%s296] sm:$0x1]
        %v385 = vlaneseq
        %v386 = vshrl.u32 %v385, 7
        %v387 = vsub.s32 0, %v386
        %v388 = vrot.slane %v383, %v387
        %v390 = vmul.f32 %v380, %v388
        %v391 = vmul.f32 %v390, 0.5
        %v392 = vtanh.pop %v391
        %v393 = vmul.f32 %v392, 0.5
        %v394 = vadd.f32 %v393, 0.5
        %v395 = vmul.f32 %v390, %v394
        %v396 = vrot.slane %v395, 4
        %v397 = vadd.f32 %v395, %v396
        %v398 = vrot.slane %v397, 2
        %v399 = vadd.f32 %v397, %v398
        %v400 = vrot.slane %v399, 1
        %v401 = vadd.f32 %v399, %v400
        %v402 = vmul.f32 %v401, 0.125
        %v403 = vsub.f32 %v395, %v402
        %v404 = vmul.f32 %v403, %v403
        %v405 = vrot.slane %v404, 4
        %v406 = vadd.f32 %v404, %v405
        %v407 = vrot.slane %v406, 2
        %v408 = vadd.f32 %v406, %v407
        %v409 = vrot.slane %v408, 1
        %v410 = vadd.f32 %v408, %v409
        %v411 = vmul.f32 %v410, 0.125
        %v412 = vadd.f32 %v411, 1e-05
        %v413 = vrsqrt.pop %v412
        %v414 = vmul.f32 %v403, %v413
        %v415 = vld [vmem:[%s4] sm:$0xff]
        %417 = vset.pattern.permute.xlu0 0
        %418 = vperm.xlu0 %417, %v415
        %v419 = vpop.permute.xlu0 %418
        %v421 = vmul.f32 %v414, %v419
        %v422 = vld [vmem:[%s5] sm:$0xff]
        %424 = vset.pattern.permute.xlu0 0
        %425 = vperm.xlu0 %424, %v422
        %v426 = vpop.permute.xlu0 %425
        %v428 = vadd.f32 %v421, %v426
        %429 = vst [vmem:[%s283] sm:$0xff] %v428
        %s430 = sand.u32 %s182, 1
        %s431 = scalar_lea.sflag [#allocation3], %s430
        %s432 = sand.u32 %s182, 1
        %s433 = smul.addr %s432, 8
        %s434 = scalar_lea.vmem [#allocation2], %s433
        // Predicated region
        $region45: #{tpu_custom_call.1} parent=43 // pred_check
          %p435 = pneg %p192
        $region46: #{tpu_custom_call.1} parent=43 // pred_check_branch
          %437 = sbr.rel (%p435) target = $region48
        $region47: #{tpu_custom_call.1} parent=43 // pred_region
          %s439 = ssub.s32 128, 128
          %440 = vsyncadd %s431, %s439
          %s441 = sadd.s32 %s25, %s24
          %s442 = smul.addr %s441, 128
          %s443 = scalar_lea.hbm %s6, %s442
          %s445 = sshll.u32 %s434, 4
          %s446 = int_to_ptr.vmem [resolvable:$true] %s445
          %448 = dma.vmem_to_hbm [thread:$0]  %s446, 128, %s443, %s431
        $region48: #{tpu_custom_call.1} parent=43 // pred_fallthru
          _
      $region44: #{tpu_custom_call.1} parent=5 // pred_fallthru
        _
      %p449 = scmp.le.s32.totalorder 2, %s15
      // Predicated region
      $region49: #{tpu_custom_call.1} parent=5 // pred_check
        %p450 = pneg %p449
      $region50: #{tpu_custom_call.1} parent=5 // pred_check_branch
        %452 = sbr.rel (%p450) target = $region52
      $region51: #{tpu_custom_call.1} parent=5 // pred_region
        %s453 = ssub.s32 %s15, 2
        // Predicated region
        $region53: #{tpu_custom_call.1} parent=51 // pred_check
          %p454 = pneg %p198
        $region54: #{tpu_custom_call.1} parent=51 // pred_check_branch
          %456 = sbr.rel (%p454) target = $region56
        $region55: #{tpu_custom_call.1} parent=51 // pred_region
          %s457 = sand.u32 %s183, 1
          %s458 = scalar_lea.sflag [#allocation3], %s457
          %s459 = sand.u32 %s183, 1
          %s460 = smul.addr %s459, 8
          %s461 = scalar_lea.vmem [#allocation2], %s460
          %462 = dma.done %s458, 128
        $region56: #{tpu_custom_call.1} parent=51 // pred_fallthru
          _
      $region52: #{tpu_custom_call.1} parent=5 // pred_fallthru
        _
    $region6: #{tpu_custom_call.1} parent=1 // loop_footer
      %s19 = sadd.s32 1, %s15
    $region7: #{tpu_custom_call.1} parent=1 // loop_footer_branch
      %14 = sbr.rel target = $region3
    $region8: #{tpu_custom_call.1} parent=1 // loop_exit
      _
    %463 = vsyncpa [#allocation3], 1
    %s464 = scalar_lea.sflag [#allocation3], 1
    %465 = vsyncpa %s464, 1

</llo_original>
